<compile_context>
chip_gen: v7x
topology: tpu7x:2x2x1
jax: 0.10.0
libtpu: 0.0.40
codegen_flags: <defaults>
</compile_context>

<pallas_src>
import functools

import jax
import jax.numpy as jnp
from jax.experimental import pallas as pl
from jax.experimental.pallas import tpu as pltpu


def _vmem_capacity_bytes():
    try:
        cap = int(pltpu.get_tpu_info().vmem_capacity_bytes)
        if cap > 0:
            return cap
    except Exception:
        pass
    return 64 << 20  # conservative default (v7x per-TensorCore VMEM)


def _largest_divisor_leq(n, limit):
    limit = max(1, min(n, limit))
    for d in range(limit, 0, -1):
        if n % d == 0:
            return d
    return 1


# --------------------------------------------------------------------------
# Pass 1: BN-half per-channel statistics (sum, sum of squares) over (N, H, W)
# --------------------------------------------------------------------------
def _bn_stats_pallas(x, half1, half2):
    """Stats of x[:, half1:half1+half2] over (N,H,W).  Needs half1 % half2 == 0."""
    n, c, h, w = x.shape
    itemsize = x.dtype.itemsize
    chunk_bytes = max(1, half2 * h * w * itemsize)
    budget_n = max(1, (2 << 20) // chunk_bytes)        # ~2 MiB blocks
    n_chunk = _largest_divisor_leq(n, budget_n)
    if n_chunk == n and n > 1:
        # keep >=2 grid steps so the DMA of the next block overlaps compute
        n_chunk = _largest_divisor_leq(n, max(1, n // 2))
    grid = (n // n_chunk,)
    c_block = half1 // half2  # whole-block channel offset (1 for even C)

    def kernel(x_ref, out_ref):
        @pl.when(pl.program_id(0) == 0)
        def _init():
            out_ref[...] = jnp.zeros_like(out_ref)

        xb = x_ref[...].astype(jnp.float32)          # (n_chunk, half2, H, W)
        s = jnp.sum(xb, axis=3, keepdims=True)       # reduce lanes (W)
        s = jnp.sum(s, axis=2, keepdims=True)        # reduce sublanes (H)
        s = jnp.sum(s, axis=0, keepdims=True)        # reduce chunk samples
        q = jnp.sum(xb * xb, axis=3, keepdims=True)
        q = jnp.sum(q, axis=2, keepdims=True)
        q = jnp.sum(q, axis=0, keepdims=True)        # (1, half2, 1, 1)
        out_ref[0:1] += s
        out_ref[1:2] += q

    stats = pl.pallas_call(
        kernel,
        out_shape=jax.ShapeDtypeStruct((2, half2, 1, 1), jnp.float32),
        grid_spec=pltpu.PrefetchScalarGridSpec(
            num_scalar_prefetch=0,
            grid=grid,
            in_specs=[pl.BlockSpec((n_chunk, half2, h, w),
                                   lambda i: (i, c_block, 0, 0))],
            out_specs=pl.BlockSpec((2, half2, 1, 1), lambda i: (0, 0, 0, 0)),
        ),
        compiler_params=pltpu.CompilerParams(
            dimension_semantics=("arbitrary",),
            vmem_limit_bytes=int(min(32 << 20, _vmem_capacity_bytes() // 2)),
        ),
    )(x)
    return stats[:, :, 0, 0]  # (2, half2): [sum; sum_sq]


# --------------------------------------------------------------------------
# Pass 2: fused per-plane normalization of the whole tensor
# --------------------------------------------------------------------------
def _ibn_norm_kernel(x_ref, prm_ref, o_ref, *, eps, inv_len):
    """Per row r (one (n,c) plane): out = x*scale + shift.

    prm columns: [sel, p, q].
      sel == 0 (IN row): scale = rsqrt(var_row+eps)*p,  shift = q - mean_row*scale
      sel == 1 (BN row): scale = p (=gamma*inv_std_bn), shift = q (=beta-mean_bn*p)
    Single-sweep stats (E[x^2] - mean^2), fused affine, no centered temporary.
    """
    x = x_ref[...].astype(jnp.float32)               # (T, L)
    prm = prm_ref[...].astype(jnp.float32)           # (T, 3)
    sel = prm[:, 0:1]
    p = prm[:, 1:2]
    q = prm[:, 2:3]

    mean = jnp.sum(x, axis=-1, keepdims=True) * inv_len
    msq = jnp.sum(x * x, axis=-1, keepdims=True) * inv_len
    var = jnp.maximum(msq - mean * mean, 0.0)
    inv_std = jax.lax.rsqrt(var + eps)               # EUP, (T,1) only

    scale_in = inv_std * p
    shift_in = q - mean * scale_in
    is_bn = sel > 0.5
    scale = jnp.where(is_bn, p, scale_in)
    shift = jnp.where(is_bn, q, shift_in)
    o_ref[...] = (x * scale + shift).astype(o_ref.dtype)


def _pick_row_tile(rows, row_bytes, target):
    """Largest multiple-of-8 divisor of `rows` whose block fits `target` bytes."""
    budget = max(1, target // max(1, row_bytes))
    best = 0
    t = (min(rows, budget) // 8) * 8
    while t >= 8:
        if rows % t == 0:
            best = t
            break
        t -= 8
    if best == 0:
        return rows  # no aligned divisor: fall back to a single full block
    if best == rows and rows % 16 == 0:
        best = rows // 2  # prefer >=2 grid steps (pipelining / megacore)
    return best


def _ibn_normalize_pallas(x2, prm, *, eps):
    """x2: (rows, length) plane view; prm: (rows, 3) [sel, p, q]."""
    rows, length = x2.shape
    itemsize = x2.dtype.itemsize
    cap = _vmem_capacity_bytes()
    target = max(1 << 20, min(8 << 20, cap // 20))
    row_bytes = length * itemsize
    row_tile = _pick_row_tile(rows, row_bytes, target)

    padded = False
    rows_eff = rows
    if row_tile == rows and rows * row_bytes > 2 * target:
        # Pathological case (rows not 8-divisible but large): pad as a last
        # resort so blocks stay VMEM-sized.  Never hit for typical N*C.
        row_tile = max(8, (target // max(1, row_bytes)) // 8 * 8)
        rows_eff = -(-rows // row_tile) * row_tile
        x2 = jnp.pad(x2, ((0, rows_eff - rows), (0, 0)))
        prm = jnp.pad(prm, ((0, rows_eff - rows), (0, 0)))
        padded = True

    grid = (rows_eff // row_tile,)
    in_block = row_tile * length * itemsize
    out_block = row_tile * length * itemsize
    prm_block = row_tile * 128 * 4  # lane-padded VMEM footprint of (T,3) f32
    need = 2 * (in_block + out_block + prm_block) + 2 * in_block + (4 << 20)
    vmem_limit = int(max(16 << 20, min(need, cap // 2)))

    # TODO(synk): when H*W < 128 (e.g. 7x7 feature maps) fold several planes
    # per lane-row for fully lane-dense stores; current layout is correct but
    # uses masked stores for such shapes.
    kernel = functools.partial(_ibn_norm_kernel, eps=float(eps),
                               inv_len=1.0 / float(length))
    out = pl.pallas_call(
        kernel,
        out_shape=jax.ShapeDtypeStruct((rows_eff, length), x2.dtype),
        grid_spec=pltpu.PrefetchScalarGridSpec(
            num_scalar_prefetch=0,
            grid=grid,
            in_specs=[
                pl.BlockSpec((row_tile, length), lambda i: (i, 0)),
                pl.BlockSpec((row_tile, 3), lambda i: (i, 0)),
            ],
            out_specs=pl.BlockSpec((row_tile, length), lambda i: (i, 0)),
        ),
        compiler_params=pltpu.CompilerParams(
            dimension_semantics=("parallel",),
            vmem_limit_bytes=vmem_limit,
        ),
    )(x2, prm)
    if padded:
        out = out[:rows]
    return out


# --------------------------------------------------------------------------
# IBN forward
# --------------------------------------------------------------------------
@functools.partial(jax.jit, static_argnames=("eps",))
def ibn_pallas(x, in_gamma, in_beta, bn_gamma, bn_beta, *, eps=1e-5):
    """IBN forward. x: (N, C, H, W) -> (N, C, H, W)."""
    n, c, h, w = x.shape
    half1 = c // 2
    half2 = c - half1
    hw = h * w
    rows = n * c
    count = n * hw

    # ---- BN-half batch statistics (training-mode BN uses batch stats).
    if half1 % half2 == 0:
        stats = _bn_stats_pallas(x, half1, half2)
        bn_sum, bn_sq = stats[0], stats[1]
    else:
        # TODO(synk): odd channel counts use a fused XLA reduction for stats
        # (same HBM traffic; the block-index trick needs half1 % half2 == 0).
        xb = x[:, half1:].astype(jnp.float32)
        bn_sum = jnp.sum(xb, axis=(0, 2, 3))
        bn_sq = jnp.sum(xb * xb, axis=(0, 2, 3))
    bn_mean = bn_sum / count
    bn_var = jnp.maximum(bn_sq / count - bn_mean * bn_mean, 0.0)
    bn_inv = jax.lax.rsqrt(bn_var + eps)
    a_bn = bn_gamma.astype(jnp.float32) * bn_inv           # folded BN scale
    b_bn = bn_beta.astype(jnp.float32) - bn_mean * a_bn    # folded BN shift

    # ---- Tiny per-channel parameter table -> per-(n,c)-plane parameters.
    sel_c = (jnp.arange(c) >= half1).astype(jnp.float32)
    p_c = jnp.concatenate([in_gamma.astype(jnp.float32), a_bn])
    q_c = jnp.concatenate([in_beta.astype(jnp.float32), b_bn])
    prm_c = jnp.stack([sel_c, p_c, q_c], axis=-1)           # (C, 3)
    prm = jnp.tile(prm_c[None], (n, 1, 1)).reshape(rows, 3)  # (N*C, 3), tiny

    # ---- Fused normalize of the whole tensor, written straight to NCHW.
    x2 = x.reshape(rows, hw)                                 # free reshape
    out2 = _ibn_normalize_pallas(x2, prm, eps=eps)
    return out2.reshape(n, c, h, w)


def ibn_reference(x, in_gamma, in_beta, bn_gamma, bn_beta, eps=1e-5):
    """Pure-JAX reference mirroring PyTorch IBN.forward (training-mode BN)."""
    n, c, h, w = x.shape
    half1 = c // 2
    x1 = x[:, :half1].astype(jnp.float32)
    x2 = x[:, half1:].astype(jnp.float32)

    m1 = jnp.mean(x1, axis=(2, 3), keepdims=True)
    v1 = jnp.var(x1, axis=(2, 3), keepdims=True)  # biased, like PyTorch IN
    y1 = (x1 - m1) / jnp.sqrt(v1 + eps)
    y1 = y1 * in_gamma[None, :, None, None] + in_beta[None, :, None, None]

    m2 = jnp.mean(x2, axis=(0, 2, 3), keepdims=True)
    v2 = jnp.var(x2, axis=(0, 2, 3), keepdims=True)  # biased, like PyTorch BN fwd
    y2 = (x2 - m2) / jnp.sqrt(v2 + eps)
    y2 = y2 * bn_gamma[None, :, None, None] + bn_beta[None, :, None, None]

    return jnp.concatenate([y1, y2], axis=1).astype(x.dtype)


if __name__ == "__main__":
    planes = 4
    half1 = planes // 2
    half2 = planes - half1
    eps = 1e-5  # default for both nn.InstanceNorm2d and nn.BatchNorm2d

    key = jax.random.PRNGKey(0)
    k1, k2, k3, k4, k5 = jax.random.split(key, 5)
    x = jax.random.normal(k1, (2, planes, 16, 16), dtype=jnp.float32)
    in_gamma = jax.random.uniform(k2, (half1,), jnp.float32, 0.5, 1.5)
    in_beta = jax.random.uniform(k3, (half1,), jnp.float32, -0.5, 0.5)
    bn_gamma = jax.random.uniform(k4, (half2,), jnp.float32, 0.5, 1.5)
    bn_beta = jax.random.uniform(k5, (half2,), jnp.float32, -0.5, 0.5)

    out = ibn_pallas(x, in_gamma, in_beta, bn_gamma, bn_beta, eps=eps)
    out = jax.block_until_ready(out)

    ref = ibn_reference(x, in_gamma, in_beta, bn_gamma, bn_beta, eps=eps)
    assert out.shape == (2, planes, 16, 16)
    assert jnp.allclose(out, ref, atol=1e-4, rtol=1e-4), float(
        jnp.max(jnp.abs(out - ref)))

    print("KERNEL_OK")
</pallas_src>

<mosaic_0001>
module attributes {stable_mosaic.version = 11 : i64} {
  func.func @kernel(%arg0: i32, %arg1: memref<1x2x16x16xf32, #tpu.memory_space<vmem>>, %arg2: memref<2x2x1x1xf32, #tpu.memory_space<vmem>>) attributes {dimension_semantics = [#tpu.dimension_semantics<arbitrary>], iteration_bounds = array<i64: 2>, scalar_prefetch = 0 : i64, scratch_operands = 0 : i64, tpu.core_type = #tpu.core_type<tc>, window_params = [{transform_indices = @transform_0, window_bounds = array<i64: 1, 2, 16, 16>}, {pipeline_mode = #tpu.pipeline_mode<synchronous>, transform_indices = @transform_1, window_bounds = array<i64: 2, 2, 1, 1>}]} {
    %c0_i32 = arith.constant 0 : i32
    %0 = arith.cmpi eq, %arg0, %c0_i32 : i32
    %1 = arith.extui %0 : i1 to i32
    %c0_i32_0 = arith.constant 0 : i32
    %2 = arith.cmpi ne, %1, %c0_i32_0 : i32
    scf.if %2 {
      %cst_24 = arith.constant 0.000000e+00 : f32
      %23 = vector.broadcast %cst_24 : f32 to vector<2x2x1x1xf32>
      %c0_25 = arith.constant 0 : index
      %c0_26 = arith.constant 0 : index
      %c0_27 = arith.constant 0 : index
      %c0_28 = arith.constant 0 : index
      %24 = vector.load %arg2[%c0_25, %c0_26, %c0_27, %c0_28] : memref<2x2x1x1xf32, #tpu.memory_space<vmem>>, vector<2x2x1x1xf32>
      tpu.vector_store %arg2[%c0_25, %c0_26, %c0_27, %c0_28], %23 {strides = array<i32>} : memref<2x2x1x1xf32, #tpu.memory_space<vmem>>, vector<2x2x1x1xf32>,
    } else {
    }
    %c0 = arith.constant 0 : index
    %c0_1 = arith.constant 0 : index
    %c0_2 = arith.constant 0 : index
    %c0_3 = arith.constant 0 : index
    %3 = vector.load %arg1[%c0, %c0_1, %c0_2, %c0_3] : memref<1x2x16x16xf32, #tpu.memory_space<vmem>>, vector<1x2x16x16xf32>
    %cst = arith.constant dense<0.000000e+00> : vector<1x2x16xf32>
    %4 = vector.multi_reduction <add>, %3, %cst [3] : vector<1x2x16x16xf32> to vector<1x2x16xf32>
    %5 = vector.shape_cast %4 : vector<1x2x16xf32> to vector<1x2x16x1xf32>
    %cst_4 = arith.constant dense<0.000000e+00> : vector<1x2x1xf32>
    %6 = vector.multi_reduction <add>, %5, %cst_4 [2] : vector<1x2x16x1xf32> to vector<1x2x1xf32>
    %7 = vector.shape_cast %6 : vector<1x2x1xf32> to vector<1x2x1x1xf32>
    %cst_5 = arith.constant dense<0.000000e+00> : vector<2x1x1xf32>
    %8 = vector.multi_reduction <add>, %7, %cst_5 [0] : vector<1x2x1x1xf32> to vector<2x1x1xf32>
    %9 = vector.shape_cast %8 : vector<2x1x1xf32> to vector<1x2x1x1xf32>
    %10 = arith.mulf %3, %3 : vector<1x2x16x16xf32>
    %cst_6 = arith.constant dense<0.000000e+00> : vector<1x2x16xf32>
    %11 = vector.multi_reduction <add>, %10, %cst_6 [3] : vector<1x2x16x16xf32> to vector<1x2x16xf32>
    %12 = vector.shape_cast %11 : vector<1x2x16xf32> to vector<1x2x16x1xf32>
    %cst_7 = arith.constant dense<0.000000e+00> : vector<1x2x1xf32>
    %13 = vector.multi_reduction <add>, %12, %cst_7 [2] : vector<1x2x16x1xf32> to vector<1x2x1xf32>
    %14 = vector.shape_cast %13 : vector<1x2x1xf32> to vector<1x2x1x1xf32>
    %cst_8 = arith.constant dense<0.000000e+00> : vector<2x1x1xf32>
    %15 = vector.multi_reduction <add>, %14, %cst_8 [0] : vector<1x2x1x1xf32> to vector<2x1x1xf32>
    %16 = vector.shape_cast %15 : vector<2x1x1xf32> to vector<1x2x1x1xf32>
    %c0_9 = arith.constant 0 : index
    %c0_10 = arith.constant 0 : index
    %c0_11 = arith.constant 0 : index
    %c0_12 = arith.constant 0 : index
    %17 = vector.load %arg2[%c0_9, %c0_10, %c0_11, %c0_12] : memref<2x2x1x1xf32, #tpu.memory_space<vmem>>, vector<1x2x1x1xf32>
    %18 = arith.addf %17, %9 : vector<1x2x1x1xf32>
    %c0_13 = arith.constant 0 : index
    %c0_14 = arith.constant 0 : index
    %c0_15 = arith.constant 0 : index
    %c0_16 = arith.constant 0 : index
    %19 = vector.load %arg2[%c0_13, %c0_14, %c0_15, %c0_16] : memref<2x2x1x1xf32, #tpu.memory_space<vmem>>, vector<1x2x1x1xf32>
    tpu.vector_store %arg2[%c0_13, %c0_14, %c0_15, %c0_16], %18 {strides = array<i32>} : memref<2x2x1x1xf32, #tpu.memory_space<vmem>>, vector<1x2x1x1xf32>,
    %c1 = arith.constant 1 : index
    %c0_17 = arith.constant 0 : index
    %c0_18 = arith.constant 0 : index
    %c0_19 = arith.constant 0 : index
    %20 = vector.load %arg2[%c1, %c0_17, %c0_18, %c0_19] : memref<2x2x1x1xf32, #tpu.memory_space<vmem>>, vector<1x2x1x1xf32>
    %21 = arith.addf %20, %16 : vector<1x2x1x1xf32>
    %c1_20 = arith.constant 1 : index
    %c0_21 = arith.constant 0 : index
    %c0_22 = arith.constant 0 : index
    %c0_23 = arith.constant 0 : index
    %22 = vector.load %arg2[%c1_20, %c0_21, %c0_22, %c0_23] : memref<2x2x1x1xf32, #tpu.memory_space<vmem>>, vector<1x2x1x1xf32>
    tpu.vector_store %arg2[%c1_20, %c0_21, %c0_22, %c0_23], %21 {strides = array<i32>} : memref<2x2x1x1xf32, #tpu.memory_space<vmem>>, vector<1x2x1x1xf32>,
    return
  }
  func.func @transform_0(%arg0: i32) -> (i32, i32, i32, i32) {
    %c1_i32 = arith.constant 1 : i32
    %c0_i32 = arith.constant 0 : i32
    %c0_i32_0 = arith.constant 0 : i32
    %c0_i32_1 = arith.constant 0 : i32
    return %arg0, %c1_i32, %c0_i32, %c0_i32_0 : i32, i32, i32, i32
  }
  func.func @transform_1(%arg0: i32) -> (i32, i32, i32, i32) {
    %c0_i32 = arith.constant 0 : i32
    %c0_i32_0 = arith.constant 0 : i32
    %c0_i32_1 = arith.constant 0 : i32
    %c0_i32_2 = arith.constant 0 : i32
    %c0_i32_3 = arith.constant 0 : i32
    return %c0_i32, %c0_i32_0, %c0_i32_1, %c0_i32_2 : i32, i32, i32, i32
  }
}

module attributes {stable_mosaic.version = 11 : i64} {
  func.func @_ibn_norm_kernel(%arg0: i32, %arg1: memref<8x256xf32, #tpu.memory_space<vmem>>, %arg2: memref<8x3xf32, #tpu.memory_space<vmem>>, %arg3: memref<8x256xf32, #tpu.memory_space<vmem>>) attributes {dimension_semantics = [#tpu.dimension_semantics<parallel>], iteration_bounds = array<i64: 1>, scalar_prefetch = 0 : i64, scratch_operands = 0 : i64, tpu.core_type = #tpu.core_type<tc>, window_params = [{transform_indices = @transform_0, window_bounds = array<i64: 8, 256>}, {transform_indices = @transform_1, window_bounds = array<i64: 8, 3>}, {transform_indices = @transform_2, window_bounds = array<i64: 8, 256>}]} {
    %c0 = arith.constant 0 : index
    %c0_0 = arith.constant 0 : index
    %0 = vector.load %arg1[%c0, %c0_0] : memref<8x256xf32, #tpu.memory_space<vmem>>, vector<8x256xf32>
    %c0_1 = arith.constant 0 : index
    %c0_2 = arith.constant 0 : index
    %1 = vector.load %arg2[%c0_1, %c0_2] : memref<8x3xf32, #tpu.memory_space<vmem>>, vector<8x3xf32>
    %2 = vector.extract_strided_slice %1 {offsets = [0, 0], sizes = [8, 1], strides = [1, 1]} : vector<8x3xf32> to vector<8x1xf32>
    %3 = vector.extract_strided_slice %1 {offsets = [0, 1], sizes = [8, 1], strides = [1, 1]} : vector<8x3xf32> to vector<8x1xf32>
    %4 = vector.extract_strided_slice %1 {offsets = [0, 2], sizes = [8, 1], strides = [1, 1]} : vector<8x3xf32> to vector<8x1xf32>
    %cst = arith.constant dense<0.000000e+00> : vector<8xf32>
    %5 = vector.multi_reduction <add>, %0, %cst [1] : vector<8x256xf32> to vector<8xf32>
    %6 = vector.shape_cast %5 : vector<8xf32> to vector<8x1xf32>
    %cst_3 = arith.constant 3.906250e-03 : f32
    %7 = vector.broadcast %cst_3 : f32 to vector<8x1xf32>
    %8 = arith.mulf %6, %7 : vector<8x1xf32>
    %9 = arith.mulf %0, %0 : vector<8x256xf32>
    %cst_4 = arith.constant dense<0.000000e+00> : vector<8xf32>
    %10 = vector.multi_reduction <add>, %9, %cst_4 [1] : vector<8x256xf32> to vector<8xf32>
    %11 = vector.shape_cast %10 : vector<8xf32> to vector<8x1xf32>
    %cst_5 = arith.constant 3.906250e-03 : f32
    %12 = vector.broadcast %cst_5 : f32 to vector<8x1xf32>
    %13 = arith.mulf %11, %12 : vector<8x1xf32>
    %14 = arith.mulf %8, %8 : vector<8x1xf32>
    %15 = arith.subf %13, %14 : vector<8x1xf32>
    %cst_6 = arith.constant 0.000000e+00 : f32
    %16 = vector.broadcast %cst_6 : f32 to vector<8x1xf32>
    %17 = arith.maximumf %15, %16 : vector<8x1xf32>
    %cst_7 = arith.constant 9.99999974E-6 : f32
    %18 = vector.broadcast %cst_7 : f32 to vector<8x1xf32>
    %19 = arith.addf %17, %18 : vector<8x1xf32>
    %20 = math.rsqrt %19 : vector<8x1xf32>
    %21 = arith.mulf %20, %3 : vector<8x1xf32>
    %22 = arith.mulf %8, %21 : vector<8x1xf32>
    %23 = arith.subf %4, %22 : vector<8x1xf32>
    %cst_8 = arith.constant 5.000000e-01 : f32
    %24 = vector.broadcast %cst_8 : f32 to vector<8x1xf32>
    %25 = arith.cmpf ogt, %2, %24 : vector<8x1xf32>
    %26 = arith.select %25, %3, %21 : vector<8x1xi1>, vector<8x1xf32>
    %27 = arith.select %25, %4, %23 : vector<8x1xi1>, vector<8x1xf32>
    %28 = vector.broadcast %26 : vector<8x1xf32> to vector<8x256xf32>
    %29 = arith.mulf %0, %28 : vector<8x256xf32>
    %30 = vector.broadcast %27 : vector<8x1xf32> to vector<8x256xf32>
    %31 = arith.addf %29, %30 : vector<8x256xf32>
    %c0_9 = arith.constant 0 : index
    %c0_10 = arith.constant 0 : index
    %32 = vector.load %arg3[%c0_9, %c0_10] : memref<8x256xf32, #tpu.memory_space<vmem>>, vector<8x256xf32>
    tpu.vector_store %arg3[%c0_9, %c0_10], %31 {strides = array<i32>} : memref<8x256xf32, #tpu.memory_space<vmem>>, vector<8x256xf32>,
    return
  }
  func.func @transform_0(%arg0: i32) -> (i32, i32) {
    %c0_i32 = arith.constant 0 : i32
    %c0_i32_0 = arith.constant 0 : i32
    return %arg0, %c0_i32 : i32, i32
  }
  func.func @transform_1(%arg0: i32) -> (i32, i32) {
    %c0_i32 = arith.constant 0 : i32
    %c0_i32_0 = arith.constant 0 : i32
    return %arg0, %c0_i32 : i32, i32
  }
  func.func @transform_2(%arg0: i32) -> (i32, i32) {
    %c0_i32 = arith.constant 0 : i32
    %c0_i32_0 = arith.constant 0 : i32
    return %arg0, %c0_i32 : i32, i32
  }
}

</mosaic_0001>

<llo_original>
// kernel: ibn_pallas.2
$region0: #{ibn_pallas.2}
  #allocation0 [shape = 'u32[]', space=smem, size = 0x4, offset = 0x4, fixed_abs, tag = 'smem constant byte address 0x4 - core index']
  #allocation1 [shape = 'u32[144,128]{1,0:T(1,128)}', space=vmem, size = 0x12000, scoped, tag = 'internal scratch']
  %s0 = inlined_call_operand.hbm [shape: f32[2,4,16,16], index: 0, kind: input, shape index: {}]
  %s1 = inlined_call_operand.vmem [shape: f32[2,2,1,1], index: 1, kind: output, shape index: {}]
  %s2 = sld [smem:[#allocation0]]
  $region45: #{ibn_pallas.2} parent=0
    _
  %s4 = ssub.s32 1, %s2
  %s5 = scalar_select 0, %s4, %s2
  $region1: #{ibn_pallas.2} parent=0
    #allocation2 [shape = 'u8[32768]{0}', space=vmem, size = 0x8000, scoped, tag = 'input window, operand 0']
    #allocation3 [shape = 's32[2]{0}', space=sflag, size = 0x8, scoped, tag = 'scoped memory for ibn_pallas.2']
    %6 = vsyncpa [#allocation3], 0
    %s7 = scalar_lea.sflag [#allocation3], 1
    %8 = vsyncpa %s7, 0
    loop: start=0, step=1, limit=4
    $region2: #{ibn_pallas.2} parent=1 // loop_pre_header
      _
    $region3: #{ibn_pallas.2} parent=1 // loop_header
      %s10 = sphi 0, %s14
      %p11 = scmp.ge.s32.totalorder %s10, 4
      %s20 = sphi 0, %s22
      %s23 = sphi 0, %s20
      %s24 = sphi 0, %s23
      %s40 = sphi 0, %s24
      %s44 = sphi 0, %s44
      %s46 = sphi 0, %s44
      %s47 = sphi 0, %s46
      %s61 = sphi 0, %s47
    $region4: #{ibn_pallas.2} parent=1 // loop_header_branch
      %13 = sbr.rel (%p11) target = $region8
    $region5: #{ibn_pallas.2} parent=1 // loop_body
      %s15 = ssub.s32 %s10, 1
      %s16 = ssub.s32 %s10, 2
      %s17 = sadd.s32 %s10, 1
      %s18 = ssub.s32 %s10, %s17
      %p19 = scmp.eq.s32.totalorder %s18, 0
      %s21 = sadd.s32 %s20, 1
      %s22 = scalar_select %p19, %s20, %s21
      %p25 = pneg %p19
      %p26 = scmp.eq.s32.totalorder %s10, 1
      %p27 = por %p25, %p26
      %p28 = scmp.ne.s32.totalorder %s20, %s23
      %p29 = scmp.eq.s32.totalorder %s10, 0
      %p30 = por %p28, %p29
      %p31 = scmp.ne.s32.totalorder %s20, %s23
      %p32 = scmp.eq.s32.totalorder %s15, 1
      %p33 = por %p31, %p32
      %p34 = scmp.ne.s32.totalorder %s23, %s24
      %p35 = scmp.eq.s32.totalorder %s15, 0
      %p36 = por %p34, %p35
      %p37 = scmp.ne.s32.totalorder %s23, %s24
      %p38 = scmp.eq.s32.totalorder %s16, 1
      %p39 = por %p37, %p38
      %p41 = scmp.ne.s32.totalorder %s24, %s40
      %p42 = scmp.eq.s32.totalorder %s16, 0
      %p43 = por %p41, %p42
      %s45 = sadd.s32 %s44, 1
      %p48 = scmp.eq.s32.totalorder %s10, 1
      %p49 = scmp.ne.s32.totalorder %s44, %s46
      %p50 = scmp.eq.s32.totalorder %s10, 0
      %p51 = por %p49, %p50
      %p52 = scmp.ne.s32.totalorder %s44, %s46
      %p53 = scmp.eq.s32.totalorder %s15, 1
      %p54 = por %p52, %p53
      %p55 = scmp.ne.s32.totalorder %s46, %s47
      %p56 = scmp.eq.s32.totalorder %s15, 0
      %p57 = por %p55, %p56
      %p58 = scmp.ne.s32.totalorder %s46, %s47
      %p59 = scmp.eq.s32.totalorder %s16, 1
      %p60 = por %p58, %p59
      %p62 = scmp.ne.s32.totalorder %s47, %s61
      %p63 = scmp.eq.s32.totalorder %s16, 0
      %p64 = por %p62, %p63
      %p65 = scmp.le.s32.totalorder 1, %s10
      %p66 = scmp.lt.s32.totalorder %s10, 3
      %p67 = pnand %p65, %p66
      %p68 = pneg %p67
      // Predicated region
      $region9: #{ibn_pallas.2} parent=5 // pred_check
        _
      $region10: #{ibn_pallas.2} parent=5 // pred_check_branch
        %70 = sbr.rel (%p67) target = $region12
      $region11: #{ibn_pallas.2} parent=5 // pred_region
        %s71 = ssub.s32 %s10, 1
      $region12: #{ibn_pallas.2} parent=5 // pred_fallthru
        _
      %p72 = scmp.lt.s32.totalorder %s10, 2
      // Predicated region
      $region13: #{ibn_pallas.2} parent=5 // pred_check
        %p73 = pneg %p72
      $region14: #{ibn_pallas.2} parent=5 // pred_check_branch
        %75 = sbr.rel (%p73) target = $region16
      $region15: #{ibn_pallas.2} parent=5 // pred_region
        // Predicated region
        $region17: #{ibn_pallas.2} parent=15 // pred_check
          %p76 = pneg %p30
        $region18: #{ibn_pallas.2} parent=15 // pred_check_branch
          %78 = sbr.rel (%p76) target = $region20
        $region19: #{ibn_pallas.2} parent=15 // pred_region
          %s79 = sand.u32 %s20, 1
          %s80 = scalar_lea.sflag [#allocation3], %s79
          %s81 = sand.u32 %s20, 1
          %s82 = smul.addr %s81, 32
          %s83 = scalar_lea.vmem [#allocation2], %s82
          %s85 = ssub.s32 512, 512
          %86 = vsyncadd %s80, %s85
          %s87 = smul.addr %s10, 8
          %s88 = sadd.s32 4, %s87
          %s89 = smul.addr %s88, 128
          %s90 = scalar_lea.hbm %s0, %s89
          %s91 = sshll.u32 %s83, 4
          %s92 = int_to_ptr.vmem [resolvable:$true] %s91
          %97 = dma.hbm_to_vmem [thread:$0]  %s90, 512, %s92, %s80, 128, 128, 8
        $region20: #{ibn_pallas.2} parent=15 // pred_fallthru
          _
      $region16: #{ibn_pallas.2} parent=5 // pred_fallthru
        _
      %p98 = scmp.le.s32.totalorder 1, %s10
      %p99 = scmp.lt.s32.totalorder %s10, 3
      %p100 = pnand %p98, %p99
      %p101 = pneg %p100
      // Predicated region
      $region21: #{ibn_pallas.2} parent=5 // pred_check
        _
      $region22: #{ibn_pallas.2} parent=5 // pred_check_branch
        %103 = sbr.rel (%p100) target = $region24
      $region23: #{ibn_pallas.2} parent=5 // pred_region
        %s104 = ssub.s32 %s10, 1
        %s105 = sand.u32 %s23, 1
        %s106 = scalar_lea.sflag [#allocation3], %s105
        %s107 = sand.u32 %s23, 1
        %s108 = smul.addr %s107, 32
        %s109 = scalar_lea.vmem [#allocation2], %s108
        // Predicated region
        $region25: #{ibn_pallas.2} parent=23 // pred_check
          %p110 = pneg %p36
        $region26: #{ibn_pallas.2} parent=23 // pred_check_branch
          %112 = sbr.rel (%p110) target = $region28
        $region27: #{ibn_pallas.2} parent=23 // pred_region
          %113 = dma.done %s106, 512
        $region28: #{ibn_pallas.2} parent=23 // pred_fallthru
          _
        %s114 = sand.u32 %s23, 1
        %s115 = scalar_lea.sflag [#allocation3], %s114
        %s116 = sand.u32 %s23, 1
        %s117 = smul.addr %s116, 32
        %s118 = scalar_lea.vmem [#allocation2], %s117
        %p119 = pneg %p36
        %p120 = pneg %p33
        %p121 = pneg %p57
        %p122 = pneg %p54
        %p123 = scmp.eq.s32.totalorder %s15, 0
        // Predicated region
        $region29: #{ibn_pallas.2} parent=23 // pred_check
          %p124 = pneg %p123
        $region30: #{ibn_pallas.2} parent=23 // pred_check_branch
          %126 = sbr.rel (%p124) target = $region32
        $region31: #{ibn_pallas.2} parent=23 // pred_region
          %vm127 = vcmask 0
          %128 = vst.msk [vmem:[%s1] sm:$0x1] %vm127, 0.0
          %129 = vst.msk [vmem:[%s1 + $0x1] sm:$0x1] %vm127, 0.0
          %130 = vst.msk [vmem:[%s1 + $0x2] sm:$0x1] %vm127, 0.0
          %131 = vst.msk [vmem:[%s1 + $0x3] sm:$0x1] %vm127, 0.0
        $region32: #{ibn_pallas.2} parent=23 // pred_fallthru
          _
        %v132 = vld [vmem:[%s109] sm:$0xff]
        %v133 = vld [vmem:[%s109 + $0x8] sm:$0xff]
        %v134 = vld [vmem:[%s109 + $0x10] sm:$0xff]
        %v135 = vld [vmem:[%s109 + $0x18] sm:$0xff]
        %vm136 = vcmask 130048
        %v137 = vsel %vm136, %v132, 0.0
        %138 = vadd.xlane.f32.xlu0 %v137
        %v139 = vpop.xlane.xlu0 %138
        %v140 = vsel %vm136, %v133, 0.0
        %141 = vadd.xlane.f32.xlu0 %v140
        %v142 = vpop.xlane.xlu0 %141
        %v143 = vsel %vm136, %v134, 0.0
        %144 = vadd.xlane.f32.xlu0 %v143
        %v145 = vpop.xlane.xlu0 %144
        %v146 = vsel %vm136, %v135, 0.0
        %147 = vadd.xlane.f32.xlu0 %v146
        %v148 = vpop.xlane.xlu0 %147
        %v149 = vadd.f32 %v139, %v142
        %v150 = vrot.slane %v149, 4
        %v151 = vadd.f32 %v149, %v150
        %v152 = vrot.slane %v151, 2
        %v153 = vadd.f32 %v151, %v152
        %v154 = vrot.slane %v153, 1
        %v155 = vadd.f32 %v153, %v154
        %v156 = vadd.f32 %v145, %v148
        %v157 = vrot.slane %v156, 4
        %v158 = vadd.f32 %v156, %v157
        %v159 = vrot.slane %v158, 2
        %v160 = vadd.f32 %v158, %v159
        %v161 = vrot.slane %v160, 1
        %v162 = vadd.f32 %v160, %v161
        %v163 = vadd.f32 %v155, 0.0
        %v164 = vadd.f32 %v162, 0.0
        %v165 = vmul.f32 %v132, %v132
        %v166 = vmul.f32 %v133, %v133
        %v167 = vmul.f32 %v134, %v134
        %v168 = vmul.f32 %v135, %v135
        %v169 = vsel %vm136, %v165, 0.0
        %170 = vadd.xlane.f32.xlu0 %v169
        %v171 = vpop.xlane.xlu0 %170
        %v172 = vsel %vm136, %v166, 0.0
        %173 = vadd.xlane.f32.xlu0 %v172
        %v174 = vpop.xlane.xlu0 %173
        %v175 = vsel %vm136, %v167, 0.0
        %176 = vadd.xlane.f32.xlu0 %v175
        %v177 = vpop.xlane.xlu0 %176
        %v178 = vsel %vm136, %v168, 0.0
        %179 = vadd.xlane.f32.xlu0 %v178
        %v180 = vpop.xlane.xlu0 %179
        %v181 = vadd.f32 %v171, %v174
        %v182 = vrot.slane %v181, 4
        %v183 = vadd.f32 %v181, %v182
        %v184 = vrot.slane %v183, 2
        %v185 = vadd.f32 %v183, %v184
        %v186 = vrot.slane %v185, 1
        %v187 = vadd.f32 %v185, %v186
        %v188 = vadd.f32 %v177, %v180
        %v189 = vrot.slane %v188, 4
        %v190 = vadd.f32 %v188, %v189
        %v191 = vrot.slane %v190, 2
        %v192 = vadd.f32 %v190, %v191
        %v193 = vrot.slane %v192, 1
        %v194 = vadd.f32 %v192, %v193
        %v195 = vadd.f32 %v187, 0.0
        %v196 = vadd.f32 %v194, 0.0
        %v197 = vld [vmem:[%s1] sm:$0x1]
        %v198 = vld [vmem:[%s1 + $0x1] sm:$0x1]
        %v199 = vadd.f32 %v197, %v163
        %v200 = vadd.f32 %v198, %v164
        %vm201 = vcmask 0
        %202 = vst.msk [vmem:[%s1] sm:$0x1] %vm201, %v199
        %203 = vst.msk [vmem:[%s1 + $0x1] sm:$0x1] %vm201, %v200
        %s204 = scalar_lea.vmem %s1, 2
        %v205 = vld [vmem:[%s204] sm:$0x1]
        %v206 = vld [vmem:[%s204 + $0x1] sm:$0x1]
        %v207 = vadd.f32 %v205, %v195
        %v208 = vadd.f32 %v206, %v196
        %209 = vst.msk [vmem:[%s204] sm:$0x1] %vm201, %v207
        %210 = vst.msk [vmem:[%s204 + $0x1] sm:$0x1] %vm201, %v208
        // Predicated region
        $region33: #{ibn_pallas.2} parent=23 // pred_check
          %p211 = pneg %p54
        $region34: #{ibn_pallas.2} parent=23 // pred_check_branch
          %213 = sbr.rel (%p211) target = $region36
        $region35: #{ibn_pallas.2} parent=23 // pred_region
          _
        $region36: #{ibn_pallas.2} parent=23 // pred_fallthru
          _
        // Predicated region
        $region37: #{ibn_pallas.2} parent=23 // pred_check
          %p214 = pneg %p54
        $region38: #{ibn_pallas.2} parent=23 // pred_check_branch
          %216 = sbr.rel (%p214) target = $region40
        $region39: #{ibn_pallas.2} parent=23 // pred_region
          _
        $region40: #{ibn_pallas.2} parent=23 // pred_fallthru
          _
      $region24: #{ibn_pallas.2} parent=5 // pred_fallthru
        _
      %p217 = scmp.le.s32.totalorder 2, %s10
      // Predicated region
      $region41: #{ibn_pallas.2} parent=5 // pred_check
        %p218 = pneg %p217
      $region42: #{ibn_pallas.2} parent=5 // pred_check_branch
        %220 = sbr.rel (%p218) target = $region44
      $region43: #{ibn_pallas.2} parent=5 // pred_region
        %s221 = ssub.s32 %s10, 2
      $region44: #{ibn_pallas.2} parent=5 // pred_fallthru
        _
    $region6: #{ibn_pallas.2} parent=1 // loop_footer
      %s14 = sadd.s32 1, %s10
    $region7: #{ibn_pallas.2} parent=1 // loop_footer_branch
      %9 = sbr.rel target = $region3
    $region8: #{ibn_pallas.2} parent=1 // loop_exit
      _
    %222 = vsyncpa [#allocation3], 1
    %s223 = scalar_lea.sflag [#allocation3], 1
    %224 = vsyncpa %s223, 1

// kernel: ibn_pallas.3
$region0: #{ibn_pallas.3}
  #allocation0 [shape = 'u32[]', space=smem, size = 0x4, offset = 0x4, fixed_abs, tag = 'smem constant byte address 0x4 - core index']
  #allocation1 [shape = 'u32[144,128]{1,0:T(1,128)}', space=vmem, size = 0x12000, scoped, tag = 'internal scratch']
  %s0 = inlined_call_operand.vmem [shape: f32[8,256], index: 0, kind: input, shape index: {}]
  %s1 = inlined_call_operand.vmem [shape: f32[8,3], index: 1, kind: input, shape index: {}]
  %s2 = inlined_call_operand.vmem [shape: f32[8,256], index: 2, kind: output, shape index: {}]
  %s3 = sld [smem:[#allocation0]]
  $region18: #{ibn_pallas.3} parent=0
    _
  %s5 = ssub.s32 1, %s3
  %s6 = scalar_select 0, %s5, %s3
  // Predicated region
  $region2: #{ibn_pallas.3} parent=0 // pred_check
    _
  $region3: #{ibn_pallas.3} parent=0 // pred_check_branch
    %8 = sbr.rel (0) target = $region5
  $region4: #{ibn_pallas.3} parent=0 // pred_region
    _
  $region5: #{ibn_pallas.3} parent=0 // pred_fallthru
    _
  // Predicated region
  $region6: #{ibn_pallas.3} parent=0 // pred_check
    _
  $region7: #{ibn_pallas.3} parent=0 // pred_check_branch
    %10 = sbr.rel (0) target = $region9
  $region8: #{ibn_pallas.3} parent=0 // pred_region
    _
  $region9: #{ibn_pallas.3} parent=0 // pred_fallthru
    _
  %v11 = vld [vmem:[%s0] sm:$0xff]
  %v12 = vld [vmem:[%s0 + $0x8] sm:$0xff]
  %v13 = vld [vmem:[%s1] sm:$0xff]
  %v14 = vadd.f32 %v11, %v12
  %15 = vadd.xlane.f32.xlu0 %v14
  %v16 = vpop.xlane.xlu0 %15
  %v17 = vmul.f32 %v16, 0.00390625
  %v18 = vmul.f32 %v11, %v11
  %v19 = vmul.f32 %v12, %v12
  %v20 = vadd.f32 %v18, %v19
  %21 = vadd.xlane.f32.xlu0 %v20
  %v22 = vpop.xlane.xlu0 %21
  %v23 = vmul.f32 %v22, 0.00390625
  %v24 = vmul.f32 %v17, %v17
  %v25 = vsub.f32 %v23, %v24
  %v26 = vmax.f32 %v25, 0.0
  %v27 = vadd.f32 %v26, 1e-05
  %v28 = vrsqrt.pop %v27
  %v29 = vmul.f32 %v28, %v13
  %v30 = vmul.f32 %v17, %v29
  %32 = vrot.lane.b32.xlu0 %v30, 1
  %v33 = vpop.permute.xlu0 %32
  %v35 = vsub.f32 %v13, %v33
  %vm36 = vcmp.gt.f32.partialorder %v13, 0.5
  %38 = vrot.lane.b32.xlu0 %v13, 127
  %v39 = vpop.permute.xlu0 %38
  %42 = vrot.lane.b32.xlu0 %v29, 127
  %v43 = vpop.permute.xlu0 %42
  %v45 = vsel %vm36, %v39, %v43
  %46 = vrot.lane.b32.xlu0 %v13, 126
  %v47 = vpop.permute.xlu0 %46
  %50 = vrot.lane.b32.xlu0 %v35, 126
  %v51 = vpop.permute.xlu0 %50
  %v53 = vsel %vm36, %v47, %v51
  %55 = vset.pattern.permute.xlu0 0
  %56 = vperm.xlu0 %55, %v45
  %v57 = vpop.permute.xlu0 %56
  %v59 = vmul.f32 %v11, %v57
  %v60 = vmul.f32 %v12, %v57
  %62 = vset.pattern.permute.xlu0 0
  %63 = vperm.xlu0 %62, %v53
  %v64 = vpop.permute.xlu0 %63
  %v66 = vadd.f32 %v59, %v64
  %v67 = vadd.f32 %v60, %v64
  %68 = vst [vmem:[%s2] sm:$0xff] %v66
  %69 = vst [vmem:[%s2 + $0x8] sm:$0xff] %v67
  // Predicated region
  $region10: #{ibn_pallas.3} parent=0 // pred_check
    _
  $region11: #{ibn_pallas.3} parent=0 // pred_check_branch
    %71 = sbr.rel (0) target = $region13
  $region12: #{ibn_pallas.3} parent=0 // pred_region
    _
  $region13: #{ibn_pallas.3} parent=0 // pred_fallthru
    _
  // Predicated region
  $region14: #{ibn_pallas.3} parent=0 // pred_check
    _
  $region15: #{ibn_pallas.3} parent=0 // pred_check_branch
    %73 = sbr.rel (0) target = $region17
  $region16: #{ibn_pallas.3} parent=0 // pred_region
    _
  $region17: #{ibn_pallas.3} parent=0 // pred_fallthru
    _

</llo_original>
